<compile_context>
chip_gen: v7x
topology: tpu7x:2x2x1
jax: 0.10.0
libtpu: 0.0.40
codegen_flags: <defaults>
</compile_context>

<pallas_src>
import functools

import jax
import jax.numpy as jnp
from jax.experimental import pallas as pl
from jax.experimental.pallas import tpu as pltpu


def _moe_kernel(x_ref, w1r_ref, ball_ref, abc_ref, w2_ref, out_ref):
    # x_ref   : (T4, P*D)            packed tokens (P tokens per row, lane-dense)
    # w1r_ref : (P*D, NH + NE)       block-diag W1_all per token slot + router cols
    # ball_ref: (1,   NH + NE)       matching first-layer / router biases
    # abc_ref : (NE,  NH + 2*NO)     [scale expansion | per-token b2 | denom ones]
    # w2_ref  : (NH,  NO)            block-diag stacked second-layer weights
    # out_ref : (T4, NO)             NO = P*D = 128 lanes (lane-dense store)
    n_h, n_o = w2_ref.shape

    x = x_ref[...]

    # 1) Fused first layer of all experts + router logits (one MXU sequence).
    hid = jnp.dot(x, w1r_ref[...], preferred_element_type=jnp.float32) + ball_ref[...]
    h = jnp.maximum(hid[:, :n_h], 0.0)            # (T4, NH) expert hidden units
    logits = hid[:, n_h:]                          # (T4, NE) router logits

    # Softmax numerator; subtracting the packed-row max is an exact stabilization
    # constant (same constant for every lane of every token in the row).
    m = jnp.max(logits, axis=-1, keepdims=True)
    p = jnp.exp(logits - m)                        # (T4, NE) unnormalized weights

    # 2) One tiny-K MXU sequence produces: numerator scale expanded to hidden lanes,
    #    p-weighted expert biases, and per-token softmax denominators.
    sbc = jnp.dot(p, abc_ref[...], preferred_element_type=jnp.float32)
    scale = sbc[:, :n_h]                           # (T4, NH)
    bias = sbc[:, n_h:n_h + n_o]                   # (T4, NO)  sum_e p_e * b2_e
    den = sbc[:, n_h + n_o:]                       # (T4, NO)  sum_e p_e (per token)

    # 3) Collapsed second layers of all experts; normalize by the softmax denom.
    y = jnp.dot(h * scale, w2_ref[...], preferred_element_type=jnp.float32) + bias
    y = y * pl.reciprocal(den, approx=True)        # EUP slot; effectively free
    out_ref[...] = y.astype(out_ref.dtype)


@functools.partial(jax.jit, static_argnames=("tile_n",))
def moe_block(x, packed, *, tile_n=1024):
    """x: (..., D). packed: dict from pack_params(). tile_n: tokens per grid step."""
    orig_shape = x.shape
    D = orig_shape[-1]
    x2 = x.reshape(-1, D)
    n_tok = x2.shape[0]

    w1r, ball = packed["w1r"], packed["ball"]
    abc, w2blk = packed["abc"], packed["w2blk"]
    NH, NO = w2blk.shape
    P = NO // D                                    # tokens packed per row

    # Packed-row tiling: multiple of 8 sublanes, at least one (8-row) block.
    n4 = -(-n_tok // P)
    tile4 = max(8, min(tile_n // P, ((n4 + 7) // 8) * 8))
    tile4 = max(8, (tile4 // 8) * 8)
    n4_pad = -(-n4 // tile4) * tile4
    pad_tok = n4_pad * P - n_tok
    if pad_tok:
        x2 = jnp.pad(x2, ((0, pad_tok), (0, 0)))
    x4 = x2.reshape(n4_pad, P * D)                 # lane-dense view, same HBM bytes

    grid = (n4_pad // tile4,)
    out4 = pl.pallas_call(
        _moe_kernel,
        out_shape=jax.ShapeDtypeStruct((n4_pad, NO), x.dtype),
        grid_spec=pltpu.PrefetchScalarGridSpec(
            num_scalar_prefetch=0,
            grid=grid,
            in_specs=[
                pl.BlockSpec((tile4, P * D), lambda i: (i, 0)),   # packed x tile
                pl.BlockSpec(w1r.shape, lambda i: (0, 0)),        # resident weights
                pl.BlockSpec(ball.shape, lambda i: (0, 0)),
                pl.BlockSpec(abc.shape, lambda i: (0, 0)),
                pl.BlockSpec(w2blk.shape, lambda i: (0, 0)),
            ],
            out_specs=pl.BlockSpec((tile4, NO), lambda i: (i, 0)),
        ),
        compiler_params=pltpu.CompilerParams(
            dimension_semantics=("parallel",)),
    )(x4, w1r, ball, abc, w2blk)

    out = out4.reshape(n4_pad * P, D)[:n_tok]
    return out.reshape(orig_shape)


def pack_params(wr, br, w1_e, b1_e, w2_e, b2_e):
    """Build lane-dense block-diagonal packed weights for the fused kernel.

    P = 128 // D tokens are carried per packed row.  With ED = E*D, NH = P*ED,
    NE = P*E, NO = P*D:
      w1r  : (P*D, NH + NE)   block-diag W1_all per token slot, router cols appended
      ball : (1,   NH + NE)   matching biases
      abc  : (NE,  NH + 2*NO) [scale expansion | per-token b2 rows | denominator ones]
      w2blk: (NH,  NO)        block-diag stacked second-layer weights
    """
    E, D, _ = w1_e.shape
    P = 128 // D if (D <= 128 and 128 % D == 0) else 1
    ED = E * D
    NH, NE, NO = P * ED, P * E, P * D

    w1_all = jnp.transpose(w1_e, (1, 0, 2)).reshape(D, ED)   # x @ w1_all -> all h_e
    b1_all = b1_e.reshape(ED)
    w2_all = w2_e.reshape(ED, D)                             # [h_0|..|h_E-1] @ w2_all

    w1r = jnp.zeros((NO, NH + NE), jnp.float32)
    ball = jnp.zeros((1, NH + NE), jnp.float32)
    w2blk = jnp.zeros((NH, NO), jnp.float32)
    abc = jnp.zeros((NE, NH + 2 * NO), jnp.float32)
    for t in range(P):
        w1r = w1r.at[t * D:(t + 1) * D, t * ED:(t + 1) * ED].set(w1_all)
        w1r = w1r.at[t * D:(t + 1) * D, NH + t * E:NH + (t + 1) * E].set(wr)
        ball = ball.at[0, t * ED:(t + 1) * ED].set(b1_all)
        ball = ball.at[0, NH + t * E:NH + (t + 1) * E].set(br[0])
        w2blk = w2blk.at[t * ED:(t + 1) * ED, t * D:(t + 1) * D].set(w2_all)
        for e in range(E):
            r = t * E + e
            abc = abc.at[r, t * ED + e * D:t * ED + (e + 1) * D].set(1.0)
            abc = abc.at[r, NH + t * D:NH + (t + 1) * D].set(b2_e[e])
            abc = abc.at[r, NH + NO + t * D:NH + NO + (t + 1) * D].set(1.0)
    return {"w1r": w1r, "ball": ball, "abc": abc, "w2blk": w2blk}


def init_params(key, input_dim, num_experts):
    """Deterministic init mimicking PyTorch Linear default (uniform +-1/sqrt(fan_in)).

    Returns per-expert weights (for the pure-JAX reference) and the packed kernel
    layout, so the packing itself is verified by the reference comparison.
    """
    ks = jax.random.split(key, 6)
    bound = float(input_dim) ** -0.5
    D, E = input_dim, num_experts

    def u(k, shape):
        return jax.random.uniform(k, shape, jnp.float32, -bound, bound)

    wr = u(ks[0], (D, E))                 # router.weight.T  (x @ wr)
    br = u(ks[1], (1, E))                 # router.bias
    w1_e = u(ks[2], (E, D, D))            # per-expert W1_e (x @ w1_e[e])
    b1_e = u(ks[3], (E, D))
    w2_e = u(ks[4], (E, D, D))            # per-expert W2_e
    b2_e = u(ks[5], (E, D))

    packed = pack_params(wr, br, w1_e, b1_e, w2_e, b2_e)
    return {"wr": wr, "br": br, "w1_e": w1_e, "b1_e": b1_e,
            "w2_e": w2_e, "b2_e": b2_e, "packed": packed}


def moe_block_ref(x, params):
    """Pure-JAX reference matching the PyTorch forward (per-expert loop)."""
    rw = jax.nn.softmax(x @ params["wr"] + params["br"][0], axis=-1)
    out = jnp.zeros_like(x)
    E = params["wr"].shape[1]
    for e in range(E):
        h = jnp.maximum(x @ params["w1_e"][e] + params["b1_e"][e], 0.0)
        y = h @ params["w2_e"][e] + params["b2_e"][e]
        out = out + rw[..., e:e + 1] * y
    return out


if __name__ == "__main__":
    input_dim = 32
    num_experts = 4
    batch, seq = 2, 8

    key = jax.random.PRNGKey(0)
    kx, kp = jax.random.split(key)
    x = jax.random.normal(kx, (batch, seq, input_dim), jnp.float32)
    params = init_params(kp, input_dim, num_experts)

    out = moe_block(x, params["packed"])
    out = jax.block_until_ready(out)

    ref = moe_block_ref(x, params)
    assert out.shape == x.shape
    # Tolerance loosened slightly for the approx (EUP) reciprocal in the kernel;
    # any packing/algebra bug would produce O(0.1-1) errors and still be caught.
    assert jnp.allclose(out, ref, atol=1e-2, rtol=1e-2), "mismatch vs reference"

    print("KERNEL_OK")
</pallas_src>

<mosaic_0001>
module attributes {stable_mosaic.version = 11 : i64} {
  func.func @_moe_kernel(%arg0: i32, %arg1: memref<8x128xf32, #tpu.memory_space<vmem>>, %arg2: memref<128x528xf32, #tpu.memory_space<vmem>>, %arg3: memref<1x528xf32, #tpu.memory_space<vmem>>, %arg4: memref<16x768xf32, #tpu.memory_space<vmem>>, %arg5: memref<512x128xf32, #tpu.memory_space<vmem>>, %arg6: memref<8x128xf32, #tpu.memory_space<vmem>>) attributes {dimension_semantics = [#tpu.dimension_semantics<parallel>], iteration_bounds = array<i64: 1>, scalar_prefetch = 0 : i64, scratch_operands = 0 : i64, tpu.core_type = #tpu.core_type<tc>, window_params = [{transform_indices = @transform_0, window_bounds = array<i64: 8, 128>}, {pipeline_mode = #tpu.pipeline_mode<synchronous>, transform_indices = @transform_1, window_bounds = array<i64: 128, 528>}, {pipeline_mode = #tpu.pipeline_mode<synchronous>, transform_indices = @transform_2, window_bounds = array<i64: 1, 528>}, {pipeline_mode = #tpu.pipeline_mode<synchronous>, transform_indices = @transform_3, window_bounds = array<i64: 16, 768>}, {pipeline_mode = #tpu.pipeline_mode<synchronous>, transform_indices = @transform_4, window_bounds = array<i64: 512, 128>}, {transform_indices = @transform_5, window_bounds = array<i64: 8, 128>}]} {
    %c0 = arith.constant 0 : index
    %c0_0 = arith.constant 0 : index
    %0 = vector.load %arg1[%c0, %c0_0] : memref<8x128xf32, #tpu.memory_space<vmem>>, vector<8x128xf32>
    %c0_1 = arith.constant 0 : index
    %c0_2 = arith.constant 0 : index
    %1 = vector.load %arg2[%c0_1, %c0_2] : memref<128x528xf32, #tpu.memory_space<vmem>>, vector<128x528xf32>
    %cst = arith.constant dense<0.000000e+00> : vector<8x528xf32>
    %2 = tpu.matmul %0, %1, %cst {dimension_numbers = #tpu.dot_dimension_numbers<[1], [0], [0], [1], [0, 0, 1, 1], [], []>} : vector<8x128xf32>, vector<128x528xf32>, vector<8x528xf32> -> vector<8x528xf32>
    %c0_3 = arith.constant 0 : index
    %c0_4 = arith.constant 0 : index
    %3 = vector.load %arg3[%c0_3, %c0_4] : memref<1x528xf32, #tpu.memory_space<vmem>>, vector<1x528xf32>
    %4 = vector.broadcast %3 : vector<1x528xf32> to vector<8x528xf32>
    %5 = arith.addf %2, %4 : vector<8x528xf32>
    %6 = vector.extract_strided_slice %5 {offsets = [0, 0], sizes = [8, 512], strides = [1, 1]} : vector<8x528xf32> to vector<8x512xf32>
    %cst_5 = arith.constant 0.000000e+00 : f32
    %7 = vector.broadcast %cst_5 : f32 to vector<8x512xf32>
    %8 = arith.maximumf %6, %7 : vector<8x512xf32>
    %9 = vector.extract_strided_slice %5 {offsets = [0, 512], sizes = [8, 16], strides = [1, 1]} : vector<8x528xf32> to vector<8x16xf32>
    %cst_6 = arith.constant dense<0xFF800000> : vector<8xf32>
    %10 = vector.multi_reduction <maximumf>, %9, %cst_6 [1] : vector<8x16xf32> to vector<8xf32>
    %11 = vector.shape_cast %10 : vector<8xf32> to vector<8x1xf32>
    %12 = vector.broadcast %11 : vector<8x1xf32> to vector<8x16xf32>
    %13 = arith.subf %9, %12 : vector<8x16xf32>
    %14 = math.exp %13 : vector<8x16xf32>
    %c0_7 = arith.constant 0 : index
    %c0_8 = arith.constant 0 : index
    %15 = vector.load %arg4[%c0_7, %c0_8] : memref<16x768xf32, #tpu.memory_space<vmem>>, vector<16x768xf32>
    %cst_9 = arith.constant dense<0.000000e+00> : vector<8x768xf32>
    %16 = tpu.matmul %14, %15, %cst_9 {dimension_numbers = #tpu.dot_dimension_numbers<[1], [0], [0], [1], [0, 0, 1, 1], [], []>} : vector<8x16xf32>, vector<16x768xf32>, vector<8x768xf32> -> vector<8x768xf32>
    %17 = vector.extract_strided_slice %16 {offsets = [0, 0], sizes = [8, 512], strides = [1, 1]} : vector<8x768xf32> to vector<8x512xf32>
    %18 = vector.extract_strided_slice %16 {offsets = [0, 512], sizes = [8, 128], strides = [1, 1]} : vector<8x768xf32> to vector<8x128xf32>
    %19 = vector.extract_strided_slice %16 {offsets = [0, 640], sizes = [8, 128], strides = [1, 1]} : vector<8x768xf32> to vector<8x128xf32>
    %20 = arith.mulf %8, %17 : vector<8x512xf32>
    %c0_10 = arith.constant 0 : index
    %c0_11 = arith.constant 0 : index
    %21 = vector.load %arg5[%c0_10, %c0_11] : memref<512x128xf32, #tpu.memory_space<vmem>>, vector<512x128xf32>
    %cst_12 = arith.constant dense<0.000000e+00> : vector<8x128xf32>
    %22 = tpu.matmul %20, %21, %cst_12 {dimension_numbers = #tpu.dot_dimension_numbers<[1], [0], [0], [1], [0, 0, 1, 1], [], []>} : vector<8x512xf32>, vector<512x128xf32>, vector<8x128xf32> -> vector<8x128xf32>
    %23 = arith.addf %22, %18 : vector<8x128xf32>
    %24 = tpu.reciprocal %19 {approx = true} : vector<8x128xf32> -> vector<8x128xf32>
    %25 = arith.mulf %23, %24 : vector<8x128xf32>
    %c0_13 = arith.constant 0 : index
    %c0_14 = arith.constant 0 : index
    %26 = vector.load %arg6[%c0_13, %c0_14] : memref<8x128xf32, #tpu.memory_space<vmem>>, vector<8x128xf32>
    tpu.vector_store %arg6[%c0_13, %c0_14], %25 {strides = array<i32>} : memref<8x128xf32, #tpu.memory_space<vmem>>, vector<8x128xf32>,
    return
  }
  func.func @transform_0(%arg0: i32) -> (i32, i32) {
    %c0_i32 = arith.constant 0 : i32
    %c0_i32_0 = arith.constant 0 : i32
    return %arg0, %c0_i32 : i32, i32
  }
  func.func @transform_1(%arg0: i32) -> (i32, i32) {
    %c0_i32 = arith.constant 0 : i32
    %c0_i32_0 = arith.constant 0 : i32
    %c0_i32_1 = arith.constant 0 : i32
    return %c0_i32, %c0_i32_0 : i32, i32
  }
  func.func @transform_2(%arg0: i32) -> (i32, i32) {
    %c0_i32 = arith.constant 0 : i32
    %c0_i32_0 = arith.constant 0 : i32
    %c0_i32_1 = arith.constant 0 : i32
    return %c0_i32, %c0_i32_0 : i32, i32
  }
  func.func @transform_3(%arg0: i32) -> (i32, i32) {
    %c0_i32 = arith.constant 0 : i32
    %c0_i32_0 = arith.constant 0 : i32
    %c0_i32_1 = arith.constant 0 : i32
    return %c0_i32, %c0_i32_0 : i32, i32
  }
  func.func @transform_4(%arg0: i32) -> (i32, i32) {
    %c0_i32 = arith.constant 0 : i32
    %c0_i32_0 = arith.constant 0 : i32
    %c0_i32_1 = arith.constant 0 : i32
    return %c0_i32, %c0_i32_0 : i32, i32
  }
  func.func @transform_5(%arg0: i32) -> (i32, i32) {
    %c0_i32 = arith.constant 0 : i32
    %c0_i32_0 = arith.constant 0 : i32
    return %arg0, %c0_i32 : i32, i32
  }
}

</mosaic_0001>

<llo_original>
// kernel: moe_block.1
$region0: #{moe_block.1}
  #allocation0 [shape = 'u32[]', space=smem, size = 0x4, offset = 0x4, fixed_abs, tag = 'smem constant byte address 0x4 - core index']
  #allocation1 [shape = 'u32[144,128]{1,0:T(1,128)}', space=vmem, size = 0x12000, scoped, tag = 'internal scratch']
  %s0 = inlined_call_operand.vmem [shape: f32[8,128], index: 0, kind: input, shape index: {}]
  %s1 = inlined_call_operand.vmem [shape: f32[128,528], index: 1, kind: input, shape index: {}]
  %s2 = inlined_call_operand.vmem [shape: f32[1,528], index: 2, kind: input, shape index: {}]
  %s3 = inlined_call_operand.vmem [shape: f32[16,768], index: 3, kind: input, shape index: {}]
  %s4 = inlined_call_operand.vmem [shape: f32[512,128], index: 4, kind: input, shape index: {}]
  %s5 = inlined_call_operand.vmem [shape: f32[8,128], index: 5, kind: output, shape index: {}]
  %s6 = sld [smem:[#allocation0]]
  $region30: #{moe_block.1} parent=0
    _
  %s8 = ssub.s32 1, %s6
  %s9 = scalar_select 0, %s8, %s6
  // Predicated region
  $region2: #{moe_block.1} parent=0 // pred_check
    _
  $region3: #{moe_block.1} parent=0 // pred_check_branch
    %11 = sbr.rel (0) target = $region5
  $region4: #{moe_block.1} parent=0 // pred_region
    _
  $region5: #{moe_block.1} parent=0 // pred_fallthru
    _
  // Predicated region
  $region6: #{moe_block.1} parent=0 // pred_check
    _
  $region7: #{moe_block.1} parent=0 // pred_check_branch
    %13 = sbr.rel (0) target = $region9
  $region8: #{moe_block.1} parent=0 // pred_region
    _
  $region9: #{moe_block.1} parent=0 // pred_fallthru
    _
  // Predicated region
  $region10: #{moe_block.1} parent=0 // pred_check
    _
  $region11: #{moe_block.1} parent=0 // pred_check_branch
    %15 = sbr.rel (0) target = $region13
  $region12: #{moe_block.1} parent=0 // pred_region
    _
  $region13: #{moe_block.1} parent=0 // pred_fallthru
    _
  // Predicated region
  $region14: #{moe_block.1} parent=0 // pred_check
    _
  $region15: #{moe_block.1} parent=0 // pred_check_branch
    %17 = sbr.rel (0) target = $region17
  $region16: #{moe_block.1} parent=0 // pred_region
    _
  $region17: #{moe_block.1} parent=0 // pred_fallthru
    _
  // Predicated region
  $region18: #{moe_block.1} parent=0 // pred_check
    _
  $region19: #{moe_block.1} parent=0 // pred_check_branch
    %19 = sbr.rel (0) target = $region21
  $region20: #{moe_block.1} parent=0 // pred_region
    _
  $region21: #{moe_block.1} parent=0 // pred_fallthru
    _
  %v20 = vld [vmem:[%s0] sm:$0xff]
  %v21 = vld [vmem:[%s1] sm:$0xff]
  %v22 = vld [vmem:[%s1 + $0x8] sm:$0xff]
  %v23 = vld [vmem:[%s1 + $0x10] sm:$0xff]
  %v24 = vld [vmem:[%s1 + $0x18] sm:$0xff]
  %v25 = vld [vmem:[%s1 + $0x20] sm:$0xff]
  %v26 = vld [vmem:[%s1 + $0x28] sm:$0xff]
  %v27 = vld [vmem:[%s1 + $0x30] sm:$0xff]
  %v28 = vld [vmem:[%s1 + $0x38] sm:$0xff]
  %v29 = vld [vmem:[%s1 + $0x40] sm:$0xff]
  %v30 = vld [vmem:[%s1 + $0x48] sm:$0xff]
  %v31 = vld [vmem:[%s1 + $0x50] sm:$0xff]
  %v32 = vld [vmem:[%s1 + $0x58] sm:$0xff]
  %v33 = vld [vmem:[%s1 + $0x60] sm:$0xff]
  %v34 = vld [vmem:[%s1 + $0x68] sm:$0xff]
  %v35 = vld [vmem:[%s1 + $0x70] sm:$0xff]
  %v36 = vld [vmem:[%s1 + $0x78] sm:$0xff]
  %v37 = vld [vmem:[%s1 + $0x80] sm:$0xff]
  %v38 = vld [vmem:[%s1 + $0x88] sm:$0xff]
  %v39 = vld [vmem:[%s1 + $0x90] sm:$0xff]
  %v40 = vld [vmem:[%s1 + $0x98] sm:$0xff]
  %v41 = vld [vmem:[%s1 + $0xa0] sm:$0xff]
  %v42 = vld [vmem:[%s1 + $0xa8] sm:$0xff]
  %v43 = vld [vmem:[%s1 + $0xb0] sm:$0xff]
  %v44 = vld [vmem:[%s1 + $0xb8] sm:$0xff]
  %v45 = vld [vmem:[%s1 + $0xc0] sm:$0xff]
  %v46 = vld [vmem:[%s1 + $0xc8] sm:$0xff]
  %v47 = vld [vmem:[%s1 + $0xd0] sm:$0xff]
  %v48 = vld [vmem:[%s1 + $0xd8] sm:$0xff]
  %v49 = vld [vmem:[%s1 + $0xe0] sm:$0xff]
  %v50 = vld [vmem:[%s1 + $0xe8] sm:$0xff]
  %v51 = vld [vmem:[%s1 + $0xf0] sm:$0xff]
  %v52 = vld [vmem:[%s1 + $0xf8] sm:$0xff]
  %v53 = vld [vmem:[%s1 + $0x100] sm:$0xff]
  %v54 = vld [vmem:[%s1 + $0x108] sm:$0xff]
  %v55 = vld [vmem:[%s1 + $0x110] sm:$0xff]
  %v56 = vld [vmem:[%s1 + $0x118] sm:$0xff]
  %v57 = vld [vmem:[%s1 + $0x120] sm:$0xff]
  %v58 = vld [vmem:[%s1 + $0x128] sm:$0xff]
  %v59 = vld [vmem:[%s1 + $0x130] sm:$0xff]
  %v60 = vld [vmem:[%s1 + $0x138] sm:$0xff]
  %v61 = vld [vmem:[%s1 + $0x140] sm:$0xff]
  %v62 = vld [vmem:[%s1 + $0x148] sm:$0xff]
  %v63 = vld [vmem:[%s1 + $0x150] sm:$0xff]
  %v64 = vld [vmem:[%s1 + $0x158] sm:$0xff]
  %v65 = vld [vmem:[%s1 + $0x160] sm:$0xff]
  %v66 = vld [vmem:[%s1 + $0x168] sm:$0xff]
  %v67 = vld [vmem:[%s1 + $0x170] sm:$0xff]
  %v68 = vld [vmem:[%s1 + $0x178] sm:$0xff]
  %v69 = vld [vmem:[%s1 + $0x180] sm:$0xff]
  %v70 = vld [vmem:[%s1 + $0x188] sm:$0xff]
  %v71 = vld [vmem:[%s1 + $0x190] sm:$0xff]
  %v72 = vld [vmem:[%s1 + $0x198] sm:$0xff]
  %v73 = vld [vmem:[%s1 + $0x1a0] sm:$0xff]
  %v74 = vld [vmem:[%s1 + $0x1a8] sm:$0xff]
  %v75 = vld [vmem:[%s1 + $0x1b0] sm:$0xff]
  %v76 = vld [vmem:[%s1 + $0x1b8] sm:$0xff]
  %v77 = vld [vmem:[%s1 + $0x1c0] sm:$0xff]
  %v78 = vld [vmem:[%s1 + $0x1c8] sm:$0xff]
  %v79 = vld [vmem:[%s1 + $0x1d0] sm:$0xff]
  %v80 = vld [vmem:[%s1 + $0x1d8] sm:$0xff]
  %v81 = vld [vmem:[%s1 + $0x1e0] sm:$0xff]
  %v82 = vld [vmem:[%s1 + $0x1e8] sm:$0xff]
  %v83 = vld [vmem:[%s1 + $0x1f0] sm:$0xff]
  %v84 = vld [vmem:[%s1 + $0x1f8] sm:$0xff]
  %v85 = vld [vmem:[%s1 + $0x200] sm:$0xff]
  %v86 = vld [vmem:[%s1 + $0x208] sm:$0xff]
  %v87 = vld [vmem:[%s1 + $0x210] sm:$0xff]
  %v88 = vld [vmem:[%s1 + $0x218] sm:$0xff]
  %v89 = vld [vmem:[%s1 + $0x220] sm:$0xff]
  %v90 = vld [vmem:[%s1 + $0x228] sm:$0xff]
  %v91 = vld [vmem:[%s1 + $0x230] sm:$0xff]
  %v92 = vld [vmem:[%s1 + $0x238] sm:$0xff]
  %v93 = vld [vmem:[%s1 + $0x240] sm:$0xff]
  %v94 = vld [vmem:[%s1 + $0x248] sm:$0xff]
  %v95 = vld [vmem:[%s1 + $0x250] sm:$0xff]
  %v96 = vld [vmem:[%s1 + $0x258] sm:$0xff]
  %v97 = vld [vmem:[%s1 + $0x260] sm:$0xff]
  %v98 = vld [vmem:[%s1 + $0x268] sm:$0xff]
  %v99 = vld [vmem:[%s1 + $0x270] sm:$0xff]
  %v100 = vld [vmem:[%s1 + $0x278] sm:$0xff]
  %v101 = vld [vmem:[%s2] sm:$0x1f]
  %v103 = vlaneseq
  %v104 = vshrl.u32 %v103, 7
  %v105 = vsub.s32 0, %v104
  %v106 = vrot.slane %v101, %v105
  %v107 = vlaneseq
  %v108 = vshrl.u32 %v107, 7
  %v109 = vsub.s32 1, %v108
  %v110 = vrot.slane %v101, %v109
  %v111 = vlaneseq
  %v112 = vshrl.u32 %v111, 7
  %v113 = vsub.s32 2, %v112
  %v114 = vrot.slane %v101, %v113
  %v115 = vlaneseq
  %v116 = vshrl.u32 %v115, 7
  %v117 = vsub.s32 3, %v116
  %v118 = vrot.slane %v101, %v117
  %v119 = vlaneseq
  %v120 = vshrl.u32 %v119, 7
  %v121 = vsub.s32 4, %v120
  %v122 = vrot.slane %v101, %v121
  %128 = vmatprep.subr.mxu0 %v22
  %129 = vmatpush1.msra.mxu0 %v21
  %130 = vmatprep.subr.mxu0 %v27
  %131 = vmatpush1.msra.mxu0 %v26
  %132 = vmatprep.subr.mxu0 %v32
  %133 = vmatpush1.msra.mxu0 %v31
  %134 = vmatprep.subr.mxu0 %v37
  %135 = vmatpush1.msra.mxu0 %v36
  %136 = vmatprep.subr.mxu0 %v42
  %137 = vmatpush1.msra.mxu0 %v41
  %138 = vmatprep.subr.mxu0 %v47
  %139 = vmatpush1.msra.mxu0 %v46
  %140 = vmatprep.subr.mxu0 %v52
  %141 = vmatpush1.msra.mxu0 %v51
  %142 = vmatprep.subr.mxu0 %v57
  %143 = vmatpush1.msra.mxu0 %v56
  %144 = vmatprep.subr.mxu0 %v62
  %145 = vmatpush1.msra.mxu0 %v61
  %146 = vmatprep.subr.mxu0 %v67
  %147 = vmatpush1.msra.mxu0 %v66
  %148 = vmatprep.subr.mxu0 %v72
  %149 = vmatpush1.msra.mxu0 %v71
  %150 = vmatprep.subr.mxu0 %v77
  %151 = vmatpush1.msra.mxu0 %v76
  %152 = vmatprep.subr.mxu0 %v82
  %153 = vmatpush1.msra.mxu0 %v81
  %154 = vmatprep.subr.mxu0 %v87
  %155 = vmatpush1.msra.mxu0 %v86
  %156 = vmatprep.subr.mxu0 %v92
  %157 = vmatpush1.msra.mxu0 %v91
  %158 = vmatprep.subr.mxu0 %v97
  %159 = vmatpush1.msra.mxu0 %v96
  %160 = vmatprep.subr.mxu0 0.0
  %161 = vmatpush1.msra.mxu0 0.0
  %162 = vmatprep.subr.mxu0 0.0
  %163 = vmatpush1.msra.mxu0 0.0
  %164 = vmatprep.subr.mxu0 0.0
  %165 = vmatpush1.msra.mxu0 0.0
  %166 = vmatprep.subr.mxu0 0.0
  %167 = vmatpush1.msra.mxu0 0.0
  %168 = vmatprep.subr.mxu0 0.0
  %169 = vmatpush1.msra.mxu0 0.0
  %170 = vmatprep.subr.mxu0 0.0
  %171 = vmatpush1.msra.mxu0 0.0
  %172 = vmatprep.subr.mxu0 0.0
  %173 = vmatpush1.msra.mxu0 0.0
  %174 = vmatprep.subr.mxu0 0.0
  %175 = vmatpush1.msra.mxu0 0.0
  %176 = vmatprep.subr.mxu0 0.0
  %177 = vmatpush1.msra.mxu0 0.0
  %178 = vmatprep.subr.mxu0 0.0
  %179 = vmatpush1.msra.mxu0 0.0
  %180 = vmatprep.subr.mxu0 0.0
  %181 = vmatpush1.msra.mxu0 0.0
  %182 = vmatprep.subr.mxu0 0.0
  %183 = vmatpush1.msra.mxu0 0.0
  %184 = vmatprep.subr.mxu0 0.0
  %185 = vmatpush1.msra.mxu0 0.0
  %186 = vmatprep.subr.mxu0 0.0
  %187 = vmatpush1.msra.mxu0 0.0
  %188 = vmatprep.subr.mxu0 0.0
  %189 = vmatpush1.msra.mxu0 0.0
  %190 = vmatprep.subr.mxu0 0.0
  %191 = vmatpush1.msra.mxu0 0.0
  %192 = vmatprep.mubr.f32.mxu0 0.0
  %193 = vmatmul.mubr.f32.gmra.mrb[0].mxu0 %v20
  %v194 = vpop.f32.mrb[0].mxu0
  %v195 = vadd.f32 %v106, %v194
  %v196 = vpop.f32.mrb[0].mxu0
  %v197 = vadd.f32 %v110, %v196
  %198 = vdwg.mxu0
  %199 = vmatprep.subr.mxu0 %v24
  %200 = vmatpush1.msra.mxu0 %v23
  %201 = vmatprep.subr.mxu0 %v29
  %202 = vmatpush1.msra.mxu0 %v28
  %203 = vmatprep.subr.mxu0 %v34
  %204 = vmatpush1.msra.mxu0 %v33
  %205 = vmatprep.subr.mxu0 %v39
  %206 = vmatpush1.msra.mxu0 %v38
  %207 = vmatprep.subr.mxu0 %v44
  %208 = vmatpush1.msra.mxu0 %v43
  %209 = vmatprep.subr.mxu0 %v49
  %210 = vmatpush1.msra.mxu0 %v48
  %211 = vmatprep.subr.mxu0 %v54
  %212 = vmatpush1.msra.mxu0 %v53
  %213 = vmatprep.subr.mxu0 %v59
  %214 = vmatpush1.msra.mxu0 %v58
  %215 = vmatprep.subr.mxu0 %v64
  %216 = vmatpush1.msra.mxu0 %v63
  %217 = vmatprep.subr.mxu0 %v69
  %218 = vmatpush1.msra.mxu0 %v68
  %219 = vmatprep.subr.mxu0 %v74
  %220 = vmatpush1.msra.mxu0 %v73
  %221 = vmatprep.subr.mxu0 %v79
  %222 = vmatpush1.msra.mxu0 %v78
  %223 = vmatprep.subr.mxu0 %v84
  %224 = vmatpush1.msra.mxu0 %v83
  %225 = vmatprep.subr.mxu0 %v89
  %226 = vmatpush1.msra.mxu0 %v88
  %227 = vmatprep.subr.mxu0 %v94
  %228 = vmatpush1.msra.mxu0 %v93
  %229 = vmatprep.subr.mxu0 %v99
  %230 = vmatpush1.msra.mxu0 %v98
  %231 = vmatprep.subr.mxu0 0.0
  %232 = vmatpush1.msra.mxu0 0.0
  %233 = vmatprep.subr.mxu0 0.0
  %234 = vmatpush1.msra.mxu0 0.0
  %235 = vmatprep.subr.mxu0 0.0
  %236 = vmatpush1.msra.mxu0 0.0
  %237 = vmatprep.subr.mxu0 0.0
  %238 = vmatpush1.msra.mxu0 0.0
  %239 = vmatprep.subr.mxu0 0.0
  %240 = vmatpush1.msra.mxu0 0.0
  %241 = vmatprep.subr.mxu0 0.0
  %242 = vmatpush1.msra.mxu0 0.0
  %243 = vmatprep.subr.mxu0 0.0
  %244 = vmatpush1.msra.mxu0 0.0
  %245 = vmatprep.subr.mxu0 0.0
  %246 = vmatpush1.msra.mxu0 0.0
  %247 = vmatprep.subr.mxu0 0.0
  %248 = vmatpush1.msra.mxu0 0.0
  %249 = vmatprep.subr.mxu0 0.0
  %250 = vmatpush1.msra.mxu0 0.0
  %251 = vmatprep.subr.mxu0 0.0
  %252 = vmatpush1.msra.mxu0 0.0
  %253 = vmatprep.subr.mxu0 0.0
  %254 = vmatpush1.msra.mxu0 0.0
  %255 = vmatprep.subr.mxu0 0.0
  %256 = vmatpush1.msra.mxu0 0.0
  %257 = vmatprep.subr.mxu0 0.0
  %258 = vmatpush1.msra.mxu0 0.0
  %259 = vmatprep.subr.mxu0 0.0
  %260 = vmatpush1.msra.mxu0 0.0
  %261 = vmatprep.subr.mxu0 0.0
  %262 = vmatpush1.msra.mxu0 0.0
  %263 = vmatprep.mubr.f32.mxu0 0.0
  %264 = vmatmul.mubr.f32.gmra.mrb[0].mxu0 %v20
  %v265 = vpop.f32.mrb[0].mxu0
  %v266 = vadd.f32 %v114, %v265
  %v267 = vpop.f32.mrb[0].mxu0
  %v268 = vadd.f32 %v118, %v267
  %269 = vdwg.mxu0
  %270 = vmatprep.subr.mxu0 0.0
  %271 = vmatpush1.msra.mxu0 %v25
  %272 = vmatprep.subr.mxu0 0.0
  %273 = vmatpush1.msra.mxu0 %v30
  %274 = vmatprep.subr.mxu0 0.0
  %275 = vmatpush1.msra.mxu0 %v35
  %276 = vmatprep.subr.mxu0 0.0
  %277 = vmatpush1.msra.mxu0 %v40
  %278 = vmatprep.subr.mxu0 0.0
  %279 = vmatpush1.msra.mxu0 %v45
  %280 = vmatprep.subr.mxu0 0.0
  %281 = vmatpush1.msra.mxu0 %v50
  %282 = vmatprep.subr.mxu0 0.0
  %283 = vmatpush1.msra.mxu0 %v55
  %284 = vmatprep.subr.mxu0 0.0
  %285 = vmatpush1.msra.mxu0 %v60
  %286 = vmatprep.subr.mxu0 0.0
  %287 = vmatpush1.msra.mxu0 %v65
  %288 = vmatprep.subr.mxu0 0.0
  %289 = vmatpush1.msra.mxu0 %v70
  %290 = vmatprep.subr.mxu0 0.0
  %291 = vmatpush1.msra.mxu0 %v75
  %292 = vmatprep.subr.mxu0 0.0
  %293 = vmatpush1.msra.mxu0 %v80
  %294 = vmatprep.subr.mxu0 0.0
  %295 = vmatpush1.msra.mxu0 %v85
  %296 = vmatprep.subr.mxu0 0.0
  %297 = vmatpush1.msra.mxu0 %v90
  %298 = vmatprep.subr.mxu0 0.0
  %299 = vmatpush1.msra.mxu0 %v95
  %300 = vmatprep.subr.mxu0 0.0
  %301 = vmatpush1.msra.mxu0 %v100
  %302 = vmatprep.subr.mxu0 0.0
  %303 = vmatpush1.msra.mxu0 0.0
  %304 = vmatprep.subr.mxu0 0.0
  %305 = vmatpush1.msra.mxu0 0.0
  %306 = vmatprep.subr.mxu0 0.0
  %307 = vmatpush1.msra.mxu0 0.0
  %308 = vmatprep.subr.mxu0 0.0
  %309 = vmatpush1.msra.mxu0 0.0
  %310 = vmatprep.subr.mxu0 0.0
  %311 = vmatpush1.msra.mxu0 0.0
  %312 = vmatprep.subr.mxu0 0.0
  %313 = vmatpush1.msra.mxu0 0.0
  %314 = vmatprep.subr.mxu0 0.0
  %315 = vmatpush1.msra.mxu0 0.0
  %316 = vmatprep.subr.mxu0 0.0
  %317 = vmatpush1.msra.mxu0 0.0
  %318 = vmatprep.subr.mxu0 0.0
  %319 = vmatpush1.msra.mxu0 0.0
  %320 = vmatprep.subr.mxu0 0.0
  %321 = vmatpush1.msra.mxu0 0.0
  %322 = vmatprep.subr.mxu0 0.0
  %323 = vmatpush1.msra.mxu0 0.0
  %324 = vmatprep.subr.mxu0 0.0
  %325 = vmatpush1.msra.mxu0 0.0
  %326 = vmatprep.subr.mxu0 0.0
  %327 = vmatpush1.msra.mxu0 0.0
  %328 = vmatprep.subr.mxu0 0.0
  %329 = vmatpush1.msra.mxu0 0.0
  %330 = vmatprep.subr.mxu0 0.0
  %331 = vmatpush1.msra.mxu0 0.0
  %332 = vmatprep.subr.mxu0 0.0
  %333 = vmatpush1.msra.mxu0 0.0
  %334 = vmatprep.mubr.f32.mxu0 0.0
  %335 = vmatmul.mubr.f32.gmra.mrb[0].mxu0 %v20
  %v336 = vpop.f32.mrb[0].mxu0
  %v337 = vadd.f32 %v122, %v336
  %v338 = vpop.f32.mrb[0].mxu0
  %339 = vdwg.mxu0
  %v340 = vmax.f32 %v195, 0.0
  %v341 = vmax.f32 %v197, 0.0
  %v342 = vmax.f32 %v266, 0.0
  %v343 = vmax.f32 %v268, 0.0
  %vm344 = vcmask 130048
  %v345 = vsel %vm344, %v337, -inf
  %346 = vmax.xlane.f32.xlu0 %v345
  %v347 = vpop.xlane.xlu0 %346
  %v348 = vsub.f32 %v337, %v347
  %v349 = vmul.f32 %v348, 1.442695
  %v350 = vpow.pop %v349
  %v351 = vld [vmem:[%s3] sm:$0xff]
  %v352 = vld [vmem:[%s3 + $0x8] sm:$0xff]
  %v353 = vld [vmem:[%s3 + $0x10] sm:$0xff]
  %v354 = vld [vmem:[%s3 + $0x18] sm:$0xff]
  %v355 = vld [vmem:[%s3 + $0x20] sm:$0xff]
  %v356 = vld [vmem:[%s3 + $0x28] sm:$0xff]
  %v357 = vld [vmem:[%s3 + $0x30] sm:$0xff]
  %v358 = vld [vmem:[%s3 + $0x38] sm:$0xff]
  %v359 = vld [vmem:[%s3 + $0x40] sm:$0xff]
  %v360 = vld [vmem:[%s3 + $0x48] sm:$0xff]
  %v361 = vld [vmem:[%s3 + $0x50] sm:$0xff]
  %v362 = vld [vmem:[%s3 + $0x58] sm:$0xff]
  %v364 = vsel %vm344, %v350, 0
  %366 = vmatprep.subr.mxu0 %v352
  %367 = vmatpush1.msra.mxu0 %v351
  %368 = vmatprep.subr.mxu0 %v358
  %369 = vmatpush1.msra.mxu0 %v357
  %370 = vmatprep.subr.mxu0 0.0
  %371 = vmatpush1.msra.mxu0 0.0
  %372 = vmatprep.subr.mxu0 0.0
  %373 = vmatpush1.msra.mxu0 0.0
  %374 = vmatprep.subr.mxu0 0.0
  %375 = vmatpush1.msra.mxu0 0.0
  %376 = vmatprep.subr.mxu0 0.0
  %377 = vmatpush1.msra.mxu0 0.0
  %378 = vmatprep.subr.mxu0 0.0
  %379 = vmatpush1.msra.mxu0 0.0
  %380 = vmatprep.subr.mxu0 0.0
  %381 = vmatpush1.msra.mxu0 0.0
  %382 = vmatprep.subr.mxu0 0.0
  %383 = vmatpush1.msra.mxu0 0.0
  %384 = vmatprep.subr.mxu0 0.0
  %385 = vmatpush1.msra.mxu0 0.0
  %386 = vmatprep.subr.mxu0 0.0
  %387 = vmatpush1.msra.mxu0 0.0
  %388 = vmatprep.subr.mxu0 0.0
  %389 = vmatpush1.msra.mxu0 0.0
  %390 = vmatprep.subr.mxu0 0.0
  %391 = vmatpush1.msra.mxu0 0.0
  %392 = vmatprep.subr.mxu0 0.0
  %393 = vmatpush1.msra.mxu0 0.0
  %394 = vmatprep.subr.mxu0 0.0
  %395 = vmatpush1.msra.mxu0 0.0
  %396 = vmatprep.subr.mxu0 0.0
  %397 = vmatpush1.msra.mxu0 0.0
  %398 = vmatprep.subr.mxu0 0.0
  %399 = vmatpush1.msra.mxu0 0.0
  %400 = vmatprep.subr.mxu0 0.0
  %401 = vmatpush1.msra.mxu0 0.0
  %402 = vmatprep.subr.mxu0 0.0
  %403 = vmatpush1.msra.mxu0 0.0
  %404 = vmatprep.subr.mxu0 0.0
  %405 = vmatpush1.msra.mxu0 0.0
  %406 = vmatprep.subr.mxu0 0.0
  %407 = vmatpush1.msra.mxu0 0.0
  %408 = vmatprep.subr.mxu0 0.0
  %409 = vmatpush1.msra.mxu0 0.0
  %410 = vmatprep.subr.mxu0 0.0
  %411 = vmatpush1.msra.mxu0 0.0
  %412 = vmatprep.subr.mxu0 0.0
  %413 = vmatpush1.msra.mxu0 0.0
  %414 = vmatprep.subr.mxu0 0.0
  %415 = vmatpush1.msra.mxu0 0.0
  %416 = vmatprep.subr.mxu0 0.0
  %417 = vmatpush1.msra.mxu0 0.0
  %418 = vmatprep.subr.mxu0 0.0
  %419 = vmatpush1.msra.mxu0 0.0
  %420 = vmatprep.subr.mxu0 0.0
  %421 = vmatpush1.msra.mxu0 0.0
  %422 = vmatprep.subr.mxu0 0.0
  %423 = vmatpush1.msra.mxu0 0.0
  %424 = vmatprep.subr.mxu0 0.0
  %425 = vmatpush1.msra.mxu0 0.0
  %426 = vmatprep.subr.mxu0 0.0
  %427 = vmatpush1.msra.mxu0 0.0
  %428 = vmatprep.subr.mxu0 0.0
  %429 = vmatpush1.msra.mxu0 0.0
  %430 = vmatprep.mubr.f32.mxu0 0.0
  %431 = vmatmul.mubr.f32.gmra.mrb[0].mxu0 %v364
  %v432 = vpop.f32.mrb[0].mxu0
  %v433 = vadd.f32 0.0, %v432
  %v434 = vpop.f32.mrb[0].mxu0
  %v435 = vadd.f32 0.0, %v434
  %436 = vdwg.mxu0
  %437 = vmatprep.subr.mxu0 %v354
  %438 = vmatpush1.msra.mxu0 %v353
  %439 = vmatprep.subr.mxu0 %v360
  %440 = vmatpush1.msra.mxu0 %v359
  %441 = vmatprep.subr.mxu0 0.0
  %442 = vmatpush1.msra.mxu0 0.0
  %443 = vmatprep.subr.mxu0 0.0
  %444 = vmatpush1.msra.mxu0 0.0
  %445 = vmatprep.subr.mxu0 0.0
  %446 = vmatpush1.msra.mxu0 0.0
  %447 = vmatprep.subr.mxu0 0.0
  %448 = vmatpush1.msra.mxu0 0.0
  %449 = vmatprep.subr.mxu0 0.0
  %450 = vmatpush1.msra.mxu0 0.0
  %451 = vmatprep.subr.mxu0 0.0
  %452 = vmatpush1.msra.mxu0 0.0
  %453 = vmatprep.subr.mxu0 0.0
  %454 = vmatpush1.msra.mxu0 0.0
  %455 = vmatprep.subr.mxu0 0.0
  %456 = vmatpush1.msra.mxu0 0.0
  %457 = vmatprep.subr.mxu0 0.0
  %458 = vmatpush1.msra.mxu0 0.0
  %459 = vmatprep.subr.mxu0 0.0
  %460 = vmatpush1.msra.mxu0 0.0
  %461 = vmatprep.subr.mxu0 0.0
  %462 = vmatpush1.msra.mxu0 0.0
  %463 = vmatprep.subr.mxu0 0.0
  %464 = vmatpush1.msra.mxu0 0.0
  %465 = vmatprep.subr.mxu0 0.0
  %466 = vmatpush1.msra.mxu0 0.0
  %467 = vmatprep.subr.mxu0 0.0
  %468 = vmatpush1.msra.mxu0 0.0
  %469 = vmatprep.subr.mxu0 0.0
  %470 = vmatpush1.msra.mxu0 0.0
  %471 = vmatprep.subr.mxu0 0.0
  %472 = vmatpush1.msra.mxu0 0.0
  %473 = vmatprep.subr.mxu0 0.0
  %474 = vmatpush1.msra.mxu0 0.0
  %475 = vmatprep.subr.mxu0 0.0
  %476 = vmatpush1.msra.mxu0 0.0
  %477 = vmatprep.subr.mxu0 0.0
  %478 = vmatpush1.msra.mxu0 0.0
  %479 = vmatprep.subr.mxu0 0.0
  %480 = vmatpush1.msra.mxu0 0.0
  %481 = vmatprep.subr.mxu0 0.0
  %482 = vmatpush1.msra.mxu0 0.0
  %483 = vmatprep.subr.mxu0 0.0
  %484 = vmatpush1.msra.mxu0 0.0
  %485 = vmatprep.subr.mxu0 0.0
  %486 = vmatpush1.msra.mxu0 0.0
  %487 = vmatprep.subr.mxu0 0.0
  %488 = vmatpush1.msra.mxu0 0.0
  %489 = vmatprep.subr.mxu0 0.0
  %490 = vmatpush1.msra.mxu0 0.0
  %491 = vmatprep.subr.mxu0 0.0
  %492 = vmatpush1.msra.mxu0 0.0
  %493 = vmatprep.subr.mxu0 0.0
  %494 = vmatpush1.msra.mxu0 0.0
  %495 = vmatprep.subr.mxu0 0.0
  %496 = vmatpush1.msra.mxu0 0.0
  %497 = vmatprep.subr.mxu0 0.0
  %498 = vmatpush1.msra.mxu0 0.0
  %499 = vmatprep.subr.mxu0 0.0
  %500 = vmatpush1.msra.mxu0 0.0
  %501 = vmatprep.mubr.f32.mxu0 0.0
  %502 = vmatmul.mubr.f32.gmra.mrb[0].mxu0 %v364
  %v503 = vpop.f32.mrb[0].mxu0
  %v504 = vadd.f32 0.0, %v503
  %v505 = vpop.f32.mrb[0].mxu0
  %v506 = vadd.f32 0.0, %v505
  %507 = vdwg.mxu0
  %508 = vmatprep.subr.mxu0 %v356
  %509 = vmatpush1.msra.mxu0 %v355
  %510 = vmatprep.subr.mxu0 %v362
  %511 = vmatpush1.msra.mxu0 %v361
  %512 = vmatprep.subr.mxu0 0.0
  %513 = vmatpush1.msra.mxu0 0.0
  %514 = vmatprep.subr.mxu0 0.0
  %515 = vmatpush1.msra.mxu0 0.0
  %516 = vmatprep.subr.mxu0 0.0
  %517 = vmatpush1.msra.mxu0 0.0
  %518 = vmatprep.subr.mxu0 0.0
  %519 = vmatpush1.msra.mxu0 0.0
  %520 = vmatprep.subr.mxu0 0.0
  %521 = vmatpush1.msra.mxu0 0.0
  %522 = vmatprep.subr.mxu0 0.0
  %523 = vmatpush1.msra.mxu0 0.0
  %524 = vmatprep.subr.mxu0 0.0
  %525 = vmatpush1.msra.mxu0 0.0
  %526 = vmatprep.subr.mxu0 0.0
  %527 = vmatpush1.msra.mxu0 0.0
  %528 = vmatprep.subr.mxu0 0.0
  %529 = vmatpush1.msra.mxu0 0.0
  %530 = vmatprep.subr.mxu0 0.0
  %531 = vmatpush1.msra.mxu0 0.0
  %532 = vmatprep.subr.mxu0 0.0
  %533 = vmatpush1.msra.mxu0 0.0
  %534 = vmatprep.subr.mxu0 0.0
  %535 = vmatpush1.msra.mxu0 0.0
  %536 = vmatprep.subr.mxu0 0.0
  %537 = vmatpush1.msra.mxu0 0.0
  %538 = vmatprep.subr.mxu0 0.0
  %539 = vmatpush1.msra.mxu0 0.0
  %540 = vmatprep.subr.mxu0 0.0
  %541 = vmatpush1.msra.mxu0 0.0
  %542 = vmatprep.subr.mxu0 0.0
  %543 = vmatpush1.msra.mxu0 0.0
  %544 = vmatprep.subr.mxu0 0.0
  %545 = vmatpush1.msra.mxu0 0.0
  %546 = vmatprep.subr.mxu0 0.0
  %547 = vmatpush1.msra.mxu0 0.0
  %548 = vmatprep.subr.mxu0 0.0
  %549 = vmatpush1.msra.mxu0 0.0
  %550 = vmatprep.subr.mxu0 0.0
  %551 = vmatpush1.msra.mxu0 0.0
  %552 = vmatprep.subr.mxu0 0.0
  %553 = vmatpush1.msra.mxu0 0.0
  %554 = vmatprep.subr.mxu0 0.0
  %555 = vmatpush1.msra.mxu0 0.0
  %556 = vmatprep.subr.mxu0 0.0
  %557 = vmatpush1.msra.mxu0 0.0
  %558 = vmatprep.subr.mxu0 0.0
  %559 = vmatpush1.msra.mxu0 0.0
  %560 = vmatprep.subr.mxu0 0.0
  %561 = vmatpush1.msra.mxu0 0.0
  %562 = vmatprep.subr.mxu0 0.0
  %563 = vmatpush1.msra.mxu0 0.0
  %564 = vmatprep.subr.mxu0 0.0
  %565 = vmatpush1.msra.mxu0 0.0
  %566 = vmatprep.subr.mxu0 0.0
  %567 = vmatpush1.msra.mxu0 0.0
  %568 = vmatprep.subr.mxu0 0.0
  %569 = vmatpush1.msra.mxu0 0.0
  %570 = vmatprep.subr.mxu0 0.0
  %571 = vmatpush1.msra.mxu0 0.0
  %572 = vmatprep.mubr.f32.mxu0 0.0
  %573 = vmatmul.mubr.f32.gmra.mrb[0].mxu0 %v364
  %v574 = vpop.f32.mrb[0].mxu0
  %v575 = vadd.f32 0.0, %v574
  %v576 = vpop.f32.mrb[0].mxu0
  %v577 = vadd.f32 0.0, %v576
  %578 = vdwg.mxu0
  %v579 = vmul.f32 %v340, %v433
  %v580 = vmul.f32 %v341, %v435
  %v581 = vmul.f32 %v342, %v504
  %v582 = vmul.f32 %v343, %v506
  %v583 = vld [vmem:[%s4] sm:$0xff]
  %v584 = vld [vmem:[%s4 + $0x8] sm:$0xff]
  %v585 = vld [vmem:[%s4 + $0x10] sm:$0xff]
  %v586 = vld [vmem:[%s4 + $0x18] sm:$0xff]
  %v587 = vld [vmem:[%s4 + $0x20] sm:$0xff]
  %v588 = vld [vmem:[%s4 + $0x28] sm:$0xff]
  %v589 = vld [vmem:[%s4 + $0x30] sm:$0xff]
  %v590 = vld [vmem:[%s4 + $0x38] sm:$0xff]
  %v591 = vld [vmem:[%s4 + $0x40] sm:$0xff]
  %v592 = vld [vmem:[%s4 + $0x48] sm:$0xff]
  %v593 = vld [vmem:[%s4 + $0x50] sm:$0xff]
  %v594 = vld [vmem:[%s4 + $0x58] sm:$0xff]
  %v595 = vld [vmem:[%s4 + $0x60] sm:$0xff]
  %v596 = vld [vmem:[%s4 + $0x68] sm:$0xff]
  %v597 = vld [vmem:[%s4 + $0x70] sm:$0xff]
  %v598 = vld [vmem:[%s4 + $0x78] sm:$0xff]
  %v599 = vld [vmem:[%s4 + $0x80] sm:$0xff]
  %v600 = vld [vmem:[%s4 + $0x88] sm:$0xff]
  %v601 = vld [vmem:[%s4 + $0x90] sm:$0xff]
  %v602 = vld [vmem:[%s4 + $0x98] sm:$0xff]
  %v603 = vld [vmem:[%s4 + $0xa0] sm:$0xff]
  %v604 = vld [vmem:[%s4 + $0xa8] sm:$0xff]
  %v605 = vld [vmem:[%s4 + $0xb0] sm:$0xff]
  %v606 = vld [vmem:[%s4 + $0xb8] sm:$0xff]
  %v607 = vld [vmem:[%s4 + $0xc0] sm:$0xff]
  %v608 = vld [vmem:[%s4 + $0xc8] sm:$0xff]
  %v609 = vld [vmem:[%s4 + $0xd0] sm:$0xff]
  %v610 = vld [vmem:[%s4 + $0xd8] sm:$0xff]
  %v611 = vld [vmem:[%s4 + $0xe0] sm:$0xff]
  %v612 = vld [vmem:[%s4 + $0xe8] sm:$0xff]
  %v613 = vld [vmem:[%s4 + $0xf0] sm:$0xff]
  %v614 = vld [vmem:[%s4 + $0xf8] sm:$0xff]
  %v615 = vld [vmem:[%s4 + $0x100] sm:$0xff]
  %v616 = vld [vmem:[%s4 + $0x108] sm:$0xff]
  %v617 = vld [vmem:[%s4 + $0x110] sm:$0xff]
  %v618 = vld [vmem:[%s4 + $0x118] sm:$0xff]
  %v619 = vld [vmem:[%s4 + $0x120] sm:$0xff]
  %v620 = vld [vmem:[%s4 + $0x128] sm:$0xff]
  %v621 = vld [vmem:[%s4 + $0x130] sm:$0xff]
  %v622 = vld [vmem:[%s4 + $0x138] sm:$0xff]
  %v623 = vld [vmem:[%s4 + $0x140] sm:$0xff]
  %v624 = vld [vmem:[%s4 + $0x148] sm:$0xff]
  %v625 = vld [vmem:[%s4 + $0x150] sm:$0xff]
  %v626 = vld [vmem:[%s4 + $0x158] sm:$0xff]
  %v627 = vld [vmem:[%s4 + $0x160] sm:$0xff]
  %v628 = vld [vmem:[%s4 + $0x168] sm:$0xff]
  %v629 = vld [vmem:[%s4 + $0x170] sm:$0xff]
  %v630 = vld [vmem:[%s4 + $0x178] sm:$0xff]
  %v631 = vld [vmem:[%s4 + $0x180] sm:$0xff]
  %v632 = vld [vmem:[%s4 + $0x188] sm:$0xff]
  %v633 = vld [vmem:[%s4 + $0x190] sm:$0xff]
  %v634 = vld [vmem:[%s4 + $0x198] sm:$0xff]
  %v635 = vld [vmem:[%s4 + $0x1a0] sm:$0xff]
  %v636 = vld [vmem:[%s4 + $0x1a8] sm:$0xff]
  %v637 = vld [vmem:[%s4 + $0x1b0] sm:$0xff]
  %v638 = vld [vmem:[%s4 + $0x1b8] sm:$0xff]
  %v639 = vld [vmem:[%s4 + $0x1c0] sm:$0xff]
  %v640 = vld [vmem:[%s4 + $0x1c8] sm:$0xff]
  %v641 = vld [vmem:[%s4 + $0x1d0] sm:$0xff]
  %v642 = vld [vmem:[%s4 + $0x1d8] sm:$0xff]
  %v643 = vld [vmem:[%s4 + $0x1e0] sm:$0xff]
  %v644 = vld [vmem:[%s4 + $0x1e8] sm:$0xff]
  %v645 = vld [vmem:[%s4 + $0x1f0] sm:$0xff]
  %v646 = vld [vmem:[%s4 + $0x1f8] sm:$0xff]
  %647 = vmatprep.subr.mxu0 0.0
  %648 = vmatpush1.msra.mxu0 %v583
  %649 = vmatprep.subr.mxu0 0.0
  %650 = vmatpush1.msra.mxu0 %v584
  %651 = vmatprep.subr.mxu0 0.0
  %652 = vmatpush1.msra.mxu0 %v585
  %653 = vmatprep.subr.mxu0 0.0
  %654 = vmatpush1.msra.mxu0 %v586
  %655 = vmatprep.subr.mxu0 0.0
  %656 = vmatpush1.msra.mxu0 %v587
  %657 = vmatprep.subr.mxu0 0.0
  %658 = vmatpush1.msra.mxu0 %v588
  %659 = vmatprep.subr.mxu0 0.0
  %660 = vmatpush1.msra.mxu0 %v589
  %661 = vmatprep.subr.mxu0 0.0
  %662 = vmatpush1.msra.mxu0 %v590
  %663 = vmatprep.subr.mxu0 0.0
  %664 = vmatpush1.msra.mxu0 %v591
  %665 = vmatprep.subr.mxu0 0.0
  %666 = vmatpush1.msra.mxu0 %v592
  %667 = vmatprep.subr.mxu0 0.0
  %668 = vmatpush1.msra.mxu0 %v593
  %669 = vmatprep.subr.mxu0 0.0
  %670 = vmatpush1.msra.mxu0 %v594
  %671 = vmatprep.subr.mxu0 0.0
  %672 = vmatpush1.msra.mxu0 %v595
  %673 = vmatprep.subr.mxu0 0.0
  %674 = vmatpush1.msra.mxu0 %v596
  %675 = vmatprep.subr.mxu0 0.0
  %676 = vmatpush1.msra.mxu0 %v597
  %677 = vmatprep.subr.mxu0 0.0
  %678 = vmatpush1.msra.mxu0 %v598
  %679 = vmatprep.subr.mxu0 0.0
  %680 = vmatpush1.msra.mxu0 %v599
  %681 = vmatprep.subr.mxu0 0.0
  %682 = vmatpush1.msra.mxu0 %v600
  %683 = vmatprep.subr.mxu0 0.0
  %684 = vmatpush1.msra.mxu0 %v601
  %685 = vmatprep.subr.mxu0 0.0
  %686 = vmatpush1.msra.mxu0 %v602
  %687 = vmatprep.subr.mxu0 0.0
  %688 = vmatpush1.msra.mxu0 %v603
  %689 = vmatprep.subr.mxu0 0.0
  %690 = vmatpush1.msra.mxu0 %v604
  %691 = vmatprep.subr.mxu0 0.0
  %692 = vmatpush1.msra.mxu0 %v605
  %693 = vmatprep.subr.mxu0 0.0
  %694 = vmatpush1.msra.mxu0 %v606
  %695 = vmatprep.subr.mxu0 0.0
  %696 = vmatpush1.msra.mxu0 %v607
  %697 = vmatprep.subr.mxu0 0.0
  %698 = vmatpush1.msra.mxu0 %v608
  %699 = vmatprep.subr.mxu0 0.0
  %700 = vmatpush1.msra.mxu0 %v609
  %701 = vmatprep.subr.mxu0 0.0
  %702 = vmatpush1.msra.mxu0 %v610
  %703 = vmatprep.subr.mxu0 0.0
  %704 = vmatpush1.msra.mxu0 %v611
  %705 = vmatprep.subr.mxu0 0.0
  %706 = vmatpush1.msra.mxu0 %v612
  %707 = vmatprep.subr.mxu0 0.0
  %708 = vmatpush1.msra.mxu0 %v613
  %709 = vmatprep.subr.mxu0 0.0
  %710 = vmatpush1.msra.mxu0 %v614
  %711 = vmatprep.mubr.f32.mxu0 %v580
  %712 = vmatmul.mubr.f32.gmra.mrb[0].mxu0 %v579
  %v713 = vpop.f32.mrb[0].mxu0
  %v714 = vadd.f32 %v575, %v713
  %v715 = vpop.f32.mrb[0].mxu0
  %716 = vdwg.mxu0
  %717 = vmatprep.subr.mxu0 0.0
  %718 = vmatpush1.msra.mxu0 %v615
  %719 = vmatprep.subr.mxu0 0.0
  %720 = vmatpush1.msra.mxu0 %v616
  %721 = vmatprep.subr.mxu0 0.0
  %722 = vmatpush1.msra.mxu0 %v617
  %723 = vmatprep.subr.mxu0 0.0
  %724 = vmatpush1.msra.mxu0 %v618
  %725 = vmatprep.subr.mxu0 0.0
  %726 = vmatpush1.msra.mxu0 %v619
  %727 = vmatprep.subr.mxu0 0.0
  %728 = vmatpush1.msra.mxu0 %v620
  %729 = vmatprep.subr.mxu0 0.0
  %730 = vmatpush1.msra.mxu0 %v621
  %731 = vmatprep.subr.mxu0 0.0
  %732 = vmatpush1.msra.mxu0 %v622
  %733 = vmatprep.subr.mxu0 0.0
  %734 = vmatpush1.msra.mxu0 %v623
  %735 = vmatprep.subr.mxu0 0.0
  %736 = vmatpush1.msra.mxu0 %v624
  %737 = vmatprep.subr.mxu0 0.0
  %738 = vmatpush1.msra.mxu0 %v625
  %739 = vmatprep.subr.mxu0 0.0
  %740 = vmatpush1.msra.mxu0 %v626
  %741 = vmatprep.subr.mxu0 0.0
  %742 = vmatpush1.msra.mxu0 %v627
  %743 = vmatprep.subr.mxu0 0.0
  %744 = vmatpush1.msra.mxu0 %v628
  %745 = vmatprep.subr.mxu0 0.0
  %746 = vmatpush1.msra.mxu0 %v629
  %747 = vmatprep.subr.mxu0 0.0
  %748 = vmatpush1.msra.mxu0 %v630
  %749 = vmatprep.subr.mxu0 0.0
  %750 = vmatpush1.msra.mxu0 %v631
  %751 = vmatprep.subr.mxu0 0.0
  %752 = vmatpush1.msra.mxu0 %v632
  %753 = vmatprep.subr.mxu0 0.0
  %754 = vmatpush1.msra.mxu0 %v633
  %755 = vmatprep.subr.mxu0 0.0
  %756 = vmatpush1.msra.mxu0 %v634
  %757 = vmatprep.subr.mxu0 0.0
  %758 = vmatpush1.msra.mxu0 %v635
  %759 = vmatprep.subr.mxu0 0.0
  %760 = vmatpush1.msra.mxu0 %v636
  %761 = vmatprep.subr.mxu0 0.0
  %762 = vmatpush1.msra.mxu0 %v637
  %763 = vmatprep.subr.mxu0 0.0
  %764 = vmatpush1.msra.mxu0 %v638
  %765 = vmatprep.subr.mxu0 0.0
  %766 = vmatpush1.msra.mxu0 %v639
  %767 = vmatprep.subr.mxu0 0.0
  %768 = vmatpush1.msra.mxu0 %v640
  %769 = vmatprep.subr.mxu0 0.0
  %770 = vmatpush1.msra.mxu0 %v641
  %771 = vmatprep.subr.mxu0 0.0
  %772 = vmatpush1.msra.mxu0 %v642
  %773 = vmatprep.subr.mxu0 0.0
  %774 = vmatpush1.msra.mxu0 %v643
  %775 = vmatprep.subr.mxu0 0.0
  %776 = vmatpush1.msra.mxu0 %v644
  %777 = vmatprep.subr.mxu0 0.0
  %778 = vmatpush1.msra.mxu0 %v645
  %779 = vmatprep.subr.mxu0 0.0
  %780 = vmatpush1.msra.mxu0 %v646
  %781 = vmatprep.mubr.f32.mxu0 %v582
  %782 = vmatmul.mubr.f32.gmra.mrb[0].mxu0 %v581
  %v783 = vpop.f32.mrb[0].mxu0
  %v784 = vadd.f32 %v714, %v783
  %v785 = vpop.f32.mrb[0].mxu0
  %786 = vdwg.mxu0
  %v787 = vrcp.pop %v577
  %v788 = vmul.f32 %v784, %v787
  %789 = vst [vmem:[%s5] sm:$0xff] %v788
  // Predicated region
  $region22: #{moe_block.1} parent=0 // pred_check
    _
  $region23: #{moe_block.1} parent=0 // pred_check_branch
    %791 = sbr.rel (0) target = $region25
  $region24: #{moe_block.1} parent=0 // pred_region
    _
  $region25: #{moe_block.1} parent=0 // pred_fallthru
    _
  // Predicated region
  $region26: #{moe_block.1} parent=0 // pred_check
    _
  $region27: #{moe_block.1} parent=0 // pred_check_branch
    %793 = sbr.rel (0) target = $region29
  $region28: #{moe_block.1} parent=0 // pred_region
    _
  $region29: #{moe_block.1} parent=0 // pred_fallthru
    _

</llo_original>
